<compile_context>
chip_gen: v5e
topology: v5e:2x2
jax: 0.10.0
libtpu: 0.0.40
codegen_flags: <defaults>
</compile_context>

<pallas_src>
import jax
import jax.numpy as jnp
from jax.experimental import pallas as pl
from jax.experimental.pallas import tpu as pltpu


def _avg_consensus_kernel(x_ref, o_ref):
    # x_ref: (TB, S, C) tile in VMEM; o_ref: (TB, C).
    # Reduce over the segment axis, accumulating in f32 without first
    # materializing an f32 copy of the whole tile.
    s = x_ref.shape[1]
    acc = jnp.sum(x_ref[...], axis=1, dtype=jnp.float32)
    o_ref[...] = (acc * (1.0 / s)).astype(o_ref.dtype)


def _choose_block_batch(B, S, C, itemsize):
    """Pick TB (batch rows per grid step).

    Target ~2 MiB input tiles (measured sweet spot for mem-bound kernels);
    2 buffers x ~2 MiB stays comfortably under the default scoped VMEM on
    v5e (16 MiB), v6e/v7x (32 MiB).  TB is a multiple of 8 (sublane-dense
    output block) unless it covers the whole batch.
    """
    target_bytes = 2 * 1024 * 1024
    row_bytes = max(1, S * C * itemsize)
    tb = target_bytes // row_bytes
    tb = (int(tb) // 8) * 8          # multiple of 8 for dense (TB, C) stores
    if tb < 8:
        tb = 8                        # fine for realistic AvgConsensus S*C
    if tb >= B:
        return B                      # block == full dim: always legal
    return tb


def avg_consensus(x: jax.Array, block_batch: int | None = None) -> jax.Array:
    """Pallas equivalent of AvgConsensus(dim=1): x.mean(dim=1, keepdim=True).

    Args:
        x: (B, S, C) array.
        block_batch: optional override of batch rows per grid step (testing).
    Returns:
        (B, 1, C) array with the same dtype as x.
    """
    B, S, C = x.shape
    tb = block_batch if block_batch is not None else _choose_block_batch(
        B, S, C, x.dtype.itemsize)
    grid = (pl.cdiv(B, tb),)

    # Lane-dense (B, C) output; out-of-range rows of a partial last block are
    # masked by Pallas on store, and the reduction is per-row so padded rows
    # never contaminate valid ones.
    out2d = pl.pallas_call(
        _avg_consensus_kernel,
        out_shape=jax.ShapeDtypeStruct((B, C), x.dtype),
        grid_spec=pltpu.PrefetchScalarGridSpec(
            num_scalar_prefetch=0,
            grid=grid,
            in_specs=[pl.BlockSpec((tb, S, C), lambda b: (b, 0, 0))],
            out_specs=pl.BlockSpec((tb, C), lambda b: (b, 0)),
        ),
        compiler_params=pltpu.CompilerParams(
            dimension_semantics=("parallel",),
        ),
    )(x)
    return out2d.reshape(B, 1, C)


if __name__ == "__main__":
    key = jax.random.PRNGKey(0)

    # Typical AvgConsensus input: (batch, num_segments, in_channels)
    B, S, C = 2, 8, 32
    x = jax.random.normal(key, (B, S, C), dtype=jnp.float32)

    out = avg_consensus(x)
    out = jax.block_until_ready(out)

    ref = jnp.mean(x, axis=1, keepdims=True)
    assert out.shape == (B, 1, C), out.shape
    assert jnp.allclose(out, ref, atol=1e-6, rtol=1e-6)

    # Exercise the multi-block path with a partial last block (grid=3, TB=8).
    B2, S2, C2 = 20, 8, 128
    x2 = jax.random.normal(jax.random.PRNGKey(1), (B2, S2, C2), dtype=jnp.float32)
    out2 = jax.block_until_ready(avg_consensus(x2, block_batch=8))
    ref2 = jnp.mean(x2, axis=1, keepdims=True)
    assert out2.shape == (B2, 1, C2), out2.shape
    assert jnp.allclose(out2, ref2, atol=1e-6, rtol=1e-6)

    print("KERNEL_OK")
</pallas_src>

<mosaic_0001>
module attributes {stable_mosaic.version = 11 : i64} {
  func.func @_avg_consensus_kernel(%arg0: i32, %arg1: memref<2x8x32xf32, #tpu.memory_space<vmem>>, %arg2: memref<2x32xf32, #tpu.memory_space<vmem>>) attributes {dimension_semantics = [#tpu.dimension_semantics<parallel>], iteration_bounds = array<i64: 1>, scalar_prefetch = 0 : i64, scratch_operands = 0 : i64, tpu.core_type = #tpu.core_type<tc>, window_params = [{transform_indices = @transform_0, window_bounds = array<i64: 2, 8, 32>}, {transform_indices = @transform_1, window_bounds = array<i64: 2, 32>}]} {
    %c0 = arith.constant 0 : index
    %c0_0 = arith.constant 0 : index
    %c0_1 = arith.constant 0 : index
    %0 = vector.load %arg1[%c0, %c0_0, %c0_1] : memref<2x8x32xf32, #tpu.memory_space<vmem>>, vector<2x8x32xf32>
    %cst = arith.constant dense<0.000000e+00> : vector<2x32xf32>
    %1 = vector.multi_reduction <add>, %0, %cst [1] : vector<2x8x32xf32> to vector<2x32xf32>
    %cst_2 = arith.constant 1.250000e-01 : f32
    %2 = vector.broadcast %cst_2 : f32 to vector<2x32xf32>
    %3 = arith.mulf %1, %2 : vector<2x32xf32>
    %c0_3 = arith.constant 0 : index
    %c0_4 = arith.constant 0 : index
    %4 = vector.load %arg2[%c0_3, %c0_4] : memref<2x32xf32, #tpu.memory_space<vmem>>, vector<2x32xf32>
    tpu.vector_store %arg2[%c0_3, %c0_4], %3 {strides = array<i32>} : memref<2x32xf32, #tpu.memory_space<vmem>>, vector<2x32xf32>,
    return
  }
  func.func @transform_0(%arg0: i32) -> (i32, i32, i32) {
    %c0_i32 = arith.constant 0 : i32
    %c0_i32_0 = arith.constant 0 : i32
    %c0_i32_1 = arith.constant 0 : i32
    return %arg0, %c0_i32, %c0_i32_0 : i32, i32, i32
  }
  func.func @transform_1(%arg0: i32) -> (i32, i32) {
    %c0_i32 = arith.constant 0 : i32
    %c0_i32_0 = arith.constant 0 : i32
    return %arg0, %c0_i32 : i32, i32
  }
}

</mosaic_0001>

<llo_original>
// kernel: tpu_custom_call.1
$region0: #{tpu_custom_call.1}
  #allocation0 [shape = 'u32[]', space=smem, size = 0x4, offset = 0x4, fixed_abs, tag = 'smem constant byte address 0x4 - core index']
  #allocation1 [shape = 'u32[72,128]{1,0:T(1,128)}', space=vmem, size = 0x9000, scoped, tag = 'internal scratch']
  %s0 = inlined_call_operand.hbm [shape: f32[2,8,32], index: 0, kind: input, shape index: {}]
  %s1 = inlined_call_operand.hbm [shape: f32[2,32], index: 1, kind: output, shape index: {}]
  %s2 = sld [smem:[#allocation0]]
  $region18: #{tpu_custom_call.1} parent=0
    _
  %s4 = ssub.s32 1, %s2
  %s5 = scalar_select 0, %s4, %s2
  $region1: #{tpu_custom_call.1} parent=0
    #allocation2 [shape = 'u8[8192]{0}', space=vmem, size = 0x2000, scoped, tag = 'input window, operand 0, single buffered']
    #allocation3 [shape = 's32[1]{0}', space=sflag, size = 0x4, scoped, tag = 'scoped memory for tpu_custom_call.1']
    #allocation4 [shape = 's32[1]{0}', space=sflag, size = 0x4, scoped, tag = 'scoped memory for tpu_custom_call.1']
    #allocation5 [shape = 'u8[1024]{0}', space=vmem, size = 0x400, scoped, tag = 'output window, operand 0, single buffered']
    %6 = vsyncpa [#allocation3], 0
    %7 = vsyncpa [#allocation4], 0
    // Predicated region
    $region2: #{tpu_custom_call.1} parent=1 // pred_check
      _
    $region3: #{tpu_custom_call.1} parent=1 // pred_check_branch
      %9 = sbr.rel (0) target = $region5
    $region4: #{tpu_custom_call.1} parent=1 // pred_region
      %11 = vsyncadd [#allocation3], 0
      %s12 = sshll.u32 %s0, 4
      %s13 = int_to_ptr.hbm [resolvable:$true] %s12
      %s14 = sshll.u32 [#allocation2], 4
      %s15 = int_to_ptr.vmem [resolvable:$true] %s14
      %20 = dma.hbm_to_vmem [thread:$0]  %s13, 256, %s15, [#allocation3], 128, 128, 8
    $region5: #{tpu_custom_call.1} parent=1 // pred_fallthru
      _
    // Predicated region
    $region6: #{tpu_custom_call.1} parent=1 // pred_check
      _
    $region7: #{tpu_custom_call.1} parent=1 // pred_check_branch
      %22 = sbr.rel (0) target = $region9
    $region8: #{tpu_custom_call.1} parent=1 // pred_region
      %24 = dma.done [#allocation3], 256
    $region9: #{tpu_custom_call.1} parent=1 // pred_fallthru
      _
    %v25 = vld [vmem:[#allocation2] sm:$0xff]
    %v26 = vld [vmem:[#allocation2 + $0x8] sm:$0xff]
    %vm27 = vcmask 261120
    %v28 = vsel %vm27, %v25, 0.0
    %v29 = vrot.slane %v28, 4
    %v30 = vadd.f32 %v28, %v29
    %v31 = vrot.slane %v30, 2
    %v32 = vadd.f32 %v30, %v31
    %v33 = vrot.slane %v32, 1
    %v34 = vadd.f32 %v32, %v33
    %v35 = vsel %vm27, %v26, 0.0
    %v36 = vrot.slane %v35, 4
    %v37 = vadd.f32 %v35, %v36
    %v38 = vrot.slane %v37, 2
    %v39 = vadd.f32 %v37, %v38
    %v40 = vrot.slane %v39, 1
    %v41 = vadd.f32 %v39, %v40
    %v42 = vmul.f32 %v34, 0.125
    %v43 = vmul.f32 %v41, 0.125
    %vm46 = vcmask 1041409
    %v47 = vsel %vm46, %v43, %v42
    %vm49 = vcmask 254976
    %50 = vst.msk [vmem:[#allocation5] sm:$0x3] %vm49, %v47
    // Predicated region
    $region10: #{tpu_custom_call.1} parent=1 // pred_check
      _
    $region11: #{tpu_custom_call.1} parent=1 // pred_check_branch
      %52 = sbr.rel (0) target = $region13
    $region12: #{tpu_custom_call.1} parent=1 // pred_region
      %54 = vsyncadd [#allocation4], 0
      %s56 = sshll.u32 [#allocation5], 4
      %s57 = int_to_ptr.vmem [resolvable:$true] %s56
      %s58 = sshll.u32 %s1, 4
      %s59 = int_to_ptr.hbm [resolvable:$true] %s58
      %61 = dma.vmem_to_hbm [thread:$0]  %s57, 32, %s59, [#allocation4]
    $region13: #{tpu_custom_call.1} parent=1 // pred_fallthru
      _
    // Predicated region
    $region14: #{tpu_custom_call.1} parent=1 // pred_check
      _
    $region15: #{tpu_custom_call.1} parent=1 // pred_check_branch
      %63 = sbr.rel (0) target = $region17
    $region16: #{tpu_custom_call.1} parent=1 // pred_region
      %65 = dma.done [#allocation4], 32
    $region17: #{tpu_custom_call.1} parent=1 // pred_fallthru
      _
    %66 = vsyncpa [#allocation3], 1
    %67 = vsyncpa [#allocation4], 1

</llo_original>
